<compile_context>
chip_gen: v6e
topology: v6e:2x2x1
jax: 0.10.0
libtpu: 0.0.40
codegen_flags: <defaults>
</compile_context>

<pallas_src>
import functools

import jax
import jax.numpy as jnp
from jax import lax
from jax.experimental import pallas as pl
from jax.experimental.pallas import tpu as pltpu


def _accumulate(x_ref, sum_ref, max_ref, *, n_valid, hw_tile, lanes):
    """Accumulate one (bt, C, hw_tile) block into the lane-partial f32 scratch.

    Only the first `n_valid` elements along HW are real data; the rest (ragged
    tail of the last HW step) are masked to 0 / -inf.  Slabs are `lanes` wide so
    the per-step arithmetic is elementwise (VPU only); the cross-lane reduce is
    deferred to the finalize step.
    """
    n_slabs = hw_tile // lanes
    for s in range(n_slabs):
        lo = s * lanes
        valid = min(max(n_valid - lo, 0), lanes)
        if valid == 0:
            continue                                    # fully out-of-range slab
        slab = x_ref[:, :, lo:lo + lanes].astype(jnp.float32)   # (bt, C, lanes)
        if valid < lanes:                               # ragged slab (static mask)
            col = lax.broadcasted_iota(jnp.int32, slab.shape, 2)
            keep = col < valid
            slab_sum = jnp.where(keep, slab, 0.0)
            slab_max = jnp.where(keep, slab, -jnp.inf)
        else:
            slab_sum = slab
            slab_max = slab
        sum_ref[...] += slab_sum
        max_ref[...] = jnp.maximum(max_ref[...], slab_max)


def _channel_attention_kernel(x_ref, w1_ref, w2_ref, o_ref,
                              sum_ref, max_ref,
                              *, hw_total, hw_tile, lanes, bt, n_hw, need_mask):
    # x_ref : (bt, C, hw_tile)   chunk of the (B, C, H*W) input
    # w1_ref: (Cr, C)            fc1 weight (1x1 conv, no bias)
    # w2_ref: (C, Cr)            fc2 weight (1x1 conv, no bias)
    # o_ref : (bt, C)            lane-dense sigmoid output
    # sum_ref/max_ref: (bt, C, lanes) f32 lane-partial running sum / max
    hw_step = pl.program_id(1)

    @pl.when(hw_step == 0)
    def _init():
        sum_ref[...] = jnp.zeros_like(sum_ref)
        max_ref[...] = jnp.full_like(max_ref, -jnp.inf)

    acc = functools.partial(_accumulate, x_ref, sum_ref, max_ref,
                            hw_tile=hw_tile, lanes=lanes)
    if need_mask:
        # Steady state: full blocks, no masking (hot loop).
        @pl.when(hw_step < n_hw - 1)
        def _steady():
            acc(n_valid=hw_tile)

        # Ragged tail: only the final HW step pays the masking cost.
        @pl.when(hw_step == n_hw - 1)
        def _tail():
            acc(n_valid=hw_total - (n_hw - 1) * hw_tile)
    else:
        acc(n_valid=hw_tile)

    @pl.when(hw_step == n_hw - 1)
    def _finalize():
        # Single cross-lane (XLU) reduce of the lane-partial accumulators.
        avg = jnp.sum(sum_ref[...], axis=-1) * (1.0 / hw_total)        # (bt, C)
        mx = jnp.max(max_ref[...], axis=-1)                            # (bt, C)
        pooled = jnp.concatenate([avg, mx], axis=0)                    # (2*bt, C)

        # fc1 on both pooled branches with ONE matmul, then ReLU.
        h1 = lax.dot_general(pooled, w1_ref[...],
                             (((1,), (1,)), ((), ())),
                             preferred_element_type=jnp.float32)       # (2*bt, Cr)
        h1 = jnp.maximum(h1, 0.0)

        # fc2 distributes over the sum: w2@h_avg + w2@h_max == w2@(h_avg+h_max).
        h_comb = h1[:bt] + h1[bt:]                                     # (bt, Cr)
        out = lax.dot_general(h_comb, w2_ref[...],
                              (((1,), (1,)), ((), ())),
                              preferred_element_type=jnp.float32)      # (bt, C)

        o_ref[...] = jax.nn.sigmoid(out).astype(o_ref.dtype)


def _tile_sizes(B, C, HW, x_itemsize, out_itemsize, budget,
                min_parallel_block_bytes=512 * 1024):
    """Choose (bt, hw_tile): per-step input block near `budget` bytes, bt keeps
    the (bt, C) output block layout friendly (multiple of the sublane pack, or
    the full batch dim), reduce bt before hw_tile when the budget is tight."""
    pack = {4: 8, 2: 16, 1: 32}.get(out_itemsize, 8)
    cands = [d for d in range(B, 0, -1)
             if B % d == 0 and (d == B or d % pack == 0)]
    if not cands:   # no layout-friendly divisor; accept any divisor (padded tiles)
        cands = [d for d in range(B, 0, -1) if B % d == 0]

    hw_floor = min(HW, 128)

    def hw_tile_for(bt):
        if bt * C * HW * x_itemsize <= budget:
            return HW
        t = (budget // (bt * C * x_itemsize)) // 128 * 128
        return max(hw_floor, min(t, HW))

    # Largest layout-friendly bt whose minimal (128-lane) block fits the budget.
    bt = cands[-1]
    for d in cands:
        if d * C * hw_floor * x_itemsize <= budget:
            bt = d
            break

    # Prefer >=2 batch tiles (v7x: 2 TensorCores share HBM) when the per-step
    # block stays big enough to amortize the ~0.35 us/step overhead.
    if B // bt == 1 and B > 1:
        for d in cands:
            if d < bt and d * C * hw_tile_for(d) * x_itemsize >= min_parallel_block_bytes:
                bt = d
                break

    return bt, hw_tile_for(bt)


def channel_attention(x, w1, w2, *, hw_block_budget_bytes=4 * 1024 * 1024):
    """x: (B, C, H, W) NCHW.  w1: (C//ratio, C).  w2: (C, C//ratio).
    Returns sigmoid(fc2(relu(fc1(avgpool(x)))) + fc2(relu(fc1(maxpool(x)))))
    with shape (B, C, 1, 1), matching the PyTorch ChannelAttention module."""
    B, C, H, W = x.shape
    Cr = w1.shape[0]
    HW = H * W
    x2 = x.reshape(B, C, HW)
    itemsize = jnp.dtype(x.dtype).itemsize

    bt, hw_tile = _tile_sizes(B, C, HW, itemsize, itemsize, hw_block_budget_bytes)
    lanes = 128 if hw_tile % 128 == 0 else hw_tile   # hw_tile < HW is always 128-aligned
    n_hw = pl.cdiv(HW, hw_tile)
    need_mask = (HW % hw_tile) != 0
    grid = (B // bt, n_hw)

    # VMEM accounting: double-buffered input block + weights + lane-partial
    # scratch + slab-sized f32 temporaries + margin; clamped within v7x's 64 MiB.
    block_bytes = bt * C * hw_tile * itemsize
    w_bytes = 2 * (w1.size * jnp.dtype(w1.dtype).itemsize
                   + w2.size * jnp.dtype(w2.dtype).itemsize)
    scratch_bytes = 2 * bt * C * lanes * 4
    temp_bytes = 6 * bt * C * lanes * 4
    vmem_limit = int(2 * block_bytes + w_bytes + scratch_bytes + temp_bytes + (4 << 20))
    vmem_limit = max(24 << 20, min(vmem_limit, 64 << 20))

    kernel = functools.partial(_channel_attention_kernel,
                               hw_total=HW, hw_tile=hw_tile, lanes=lanes,
                               bt=bt, n_hw=n_hw, need_mask=need_mask)

    cost = pl.CostEstimate(
        flops=int(2 * B * C * HW + 8 * B * C * Cr),
        transcendentals=int(B * C),
        bytes_accessed=int(B * C * HW * itemsize
                           + 2 * C * Cr * jnp.dtype(w1.dtype).itemsize
                           + B * C * itemsize),
    )

    out = pl.pallas_call(
        kernel,
        out_shape=jax.ShapeDtypeStruct((B, C), x.dtype),
        grid_spec=pltpu.PrefetchScalarGridSpec(
            num_scalar_prefetch=0,
            grid=grid,
            in_specs=[
                # TODO(synk): on v7x, sweep pipeline_mode=pl.Buffered(3) on this
                # spec if an xprof trace shows DMA gaps at HW-step boundaries.
                pl.BlockSpec((bt, C, hw_tile), lambda b, h: (b, 0, h)),
                pl.BlockSpec((Cr, C), lambda b, h: (0, 0)),
                pl.BlockSpec((C, Cr), lambda b, h: (0, 0)),
            ],
            out_specs=pl.BlockSpec((bt, C), lambda b, h: (b, 0)),
            scratch_shapes=[
                pltpu.VMEM((bt, C, lanes), jnp.float32),   # lane-partial running sum
                pltpu.VMEM((bt, C, lanes), jnp.float32),   # lane-partial running max
            ],
        ),
        compiler_params=pltpu.CompilerParams(
            # Batch axis parallel (megacore-shardable), HW reduction axis last.
            # TODO(synk): sweep pltpu.CORE_PARALLEL on the batch axis for v7x.
            dimension_semantics=("parallel", "arbitrary"),
            vmem_limit_bytes=vmem_limit),
        cost_estimate=cost,
    )(x2, w1, w2)

    return out.reshape(B, C, 1, 1)


def reference_channel_attention(x, w1, w2):
    xf = x.astype(jnp.float32)
    avg = jnp.mean(xf, axis=(2, 3))                       # (B, C)
    mx = jnp.max(xf, axis=(2, 3))                         # (B, C)

    def branch(p):
        h = jnp.maximum(p @ w1.astype(jnp.float32).T, 0.0)
        return h @ w2.astype(jnp.float32).T

    out = jax.nn.sigmoid(branch(avg) + branch(mx))
    return out[:, :, None, None].astype(x.dtype)


if __name__ == "__main__":
    key = jax.random.PRNGKey(0)
    kx, k1, k2, kx2 = jax.random.split(key, 4)

    # Case 1: small canonical shape, whole spatial extent in one block.
    B, C, H, W = 2, 64, 16, 16
    ratio = 16
    Cr = C // ratio
    x = jax.random.normal(kx, (B, C, H, W), dtype=jnp.float32)
    w1 = jax.random.normal(k1, (Cr, C), dtype=jnp.float32) * (1.0 / jnp.sqrt(C))
    w2 = jax.random.normal(k2, (C, Cr), dtype=jnp.float32) * (1.0 / jnp.sqrt(Cr))

    out = jax.block_until_ready(channel_attention(x, w1, w2))
    ref = reference_channel_attention(x, w1, w2)
    assert out.shape == (B, C, 1, 1)
    assert jnp.allclose(out, ref, atol=1e-5, rtol=1e-5)

    # Case 2: force the streaming + ragged-tail path (HW=400, hw_tile=128).
    H2, W2 = 20, 20
    x_b = jax.random.normal(kx2, (B, C, H2, W2), dtype=jnp.float32)
    out_b = jax.block_until_ready(
        channel_attention(x_b, w1, w2, hw_block_budget_bytes=64 * 1024))
    ref_b = reference_channel_attention(x_b, w1, w2)
    assert out_b.shape == (B, C, 1, 1)
    assert jnp.allclose(out_b, ref_b, atol=1e-5, rtol=1e-5)

    print("KERNEL_OK")
</pallas_src>

<mosaic_0001>
module attributes {stable_mosaic.version = 11 : i64} {
  func.func @_channel_attention_kernel(%arg0: i32, %arg1: i32, %arg2: memref<2x64x256xf32, #tpu.memory_space<vmem>>, %arg3: memref<4x64xf32, #tpu.memory_space<vmem>>, %arg4: memref<64x4xf32, #tpu.memory_space<vmem>>, %arg5: memref<2x64xf32, #tpu.memory_space<vmem>>, %arg6: memref<2x64x128xf32, #tpu.memory_space<vmem>>, %arg7: memref<2x64x128xf32, #tpu.memory_space<vmem>>) attributes {dimension_semantics = [#tpu.dimension_semantics<parallel>, #tpu.dimension_semantics<arbitrary>], iteration_bounds = array<i64: 1, 1>, scalar_prefetch = 0 : i64, scratch_operands = 2 : i64, tpu.core_type = #tpu.core_type<tc>, window_params = [{transform_indices = @transform_0, window_bounds = array<i64: 2, 64, 256>}, {pipeline_mode = #tpu.pipeline_mode<synchronous>, transform_indices = @transform_1, window_bounds = array<i64: 4, 64>}, {pipeline_mode = #tpu.pipeline_mode<synchronous>, transform_indices = @transform_2, window_bounds = array<i64: 64, 4>}, {transform_indices = @transform_3, window_bounds = array<i64: 2, 64>}]} {
    %c0_i32 = arith.constant 0 : i32
    %0 = arith.cmpi eq, %arg1, %c0_i32 : i32
    %1 = arith.extui %0 : i1 to i32
    %c0_i32_0 = arith.constant 0 : i32
    %2 = arith.cmpi ne, %1, %c0_i32_0 : i32
    scf.if %2 {
      %cst = arith.constant 0.000000e+00 : f32
      %20 = vector.broadcast %cst : f32 to vector<2x64x128xf32>
      %c0_31 = arith.constant 0 : index
      %c0_32 = arith.constant 0 : index
      %c0_33 = arith.constant 0 : index
      %21 = vector.load %arg6[%c0_31, %c0_32, %c0_33] : memref<2x64x128xf32, #tpu.memory_space<vmem>>, vector<2x64x128xf32>
      tpu.vector_store %arg6[%c0_31, %c0_32, %c0_33], %20 {strides = array<i32>} : memref<2x64x128xf32, #tpu.memory_space<vmem>>, vector<2x64x128xf32>,
      %cst_34 = arith.constant 0xFF800000 : f32
      %22 = vector.broadcast %cst_34 : f32 to vector<2x64x128xf32>
      %c0_35 = arith.constant 0 : index
      %c0_36 = arith.constant 0 : index
      %c0_37 = arith.constant 0 : index
      %23 = vector.load %arg7[%c0_35, %c0_36, %c0_37] : memref<2x64x128xf32, #tpu.memory_space<vmem>>, vector<2x64x128xf32>
      tpu.vector_store %arg7[%c0_35, %c0_36, %c0_37], %22 {strides = array<i32>} : memref<2x64x128xf32, #tpu.memory_space<vmem>>, vector<2x64x128xf32>,
    } else {
    }
    %c0 = arith.constant 0 : index
    %c0_1 = arith.constant 0 : index
    %c0_2 = arith.constant 0 : index
    %3 = vector.load %arg2[%c0, %c0_1, %c0_2] : memref<2x64x256xf32, #tpu.memory_space<vmem>>, vector<2x64x128xf32>
    %c0_3 = arith.constant 0 : index
    %c0_4 = arith.constant 0 : index
    %c0_5 = arith.constant 0 : index
    %4 = vector.load %arg6[%c0_3, %c0_4, %c0_5] : memref<2x64x128xf32, #tpu.memory_space<vmem>>, vector<2x64x128xf32>
    %5 = arith.addf %4, %3 : vector<2x64x128xf32>
    %c0_6 = arith.constant 0 : index
    %c0_7 = arith.constant 0 : index
    %c0_8 = arith.constant 0 : index
    %6 = vector.load %arg6[%c0_6, %c0_7, %c0_8] : memref<2x64x128xf32, #tpu.memory_space<vmem>>, vector<2x64x128xf32>
    tpu.vector_store %arg6[%c0_6, %c0_7, %c0_8], %5 {strides = array<i32>} : memref<2x64x128xf32, #tpu.memory_space<vmem>>, vector<2x64x128xf32>,
    %c0_9 = arith.constant 0 : index
    %c0_10 = arith.constant 0 : index
    %c0_11 = arith.constant 0 : index
    %7 = vector.load %arg7[%c0_9, %c0_10, %c0_11] : memref<2x64x128xf32, #tpu.memory_space<vmem>>, vector<2x64x128xf32>
    %8 = arith.maximumf %7, %3 : vector<2x64x128xf32>
    %c0_12 = arith.constant 0 : index
    %c0_13 = arith.constant 0 : index
    %c0_14 = arith.constant 0 : index
    %9 = vector.load %arg7[%c0_12, %c0_13, %c0_14] : memref<2x64x128xf32, #tpu.memory_space<vmem>>, vector<2x64x128xf32>
    tpu.vector_store %arg7[%c0_12, %c0_13, %c0_14], %8 {strides = array<i32>} : memref<2x64x128xf32, #tpu.memory_space<vmem>>, vector<2x64x128xf32>,
    %c0_15 = arith.constant 0 : index
    %c0_16 = arith.constant 0 : index
    %c128 = arith.constant 128 : index
    %10 = vector.load %arg2[%c0_15, %c0_16, %c128] : memref<2x64x256xf32, #tpu.memory_space<vmem>>, vector<2x64x128xf32>
    %c0_17 = arith.constant 0 : index
    %c0_18 = arith.constant 0 : index
    %c0_19 = arith.constant 0 : index
    %11 = vector.load %arg6[%c0_17, %c0_18, %c0_19] : memref<2x64x128xf32, #tpu.memory_space<vmem>>, vector<2x64x128xf32>
    %12 = arith.addf %11, %10 : vector<2x64x128xf32>
    %c0_20 = arith.constant 0 : index
    %c0_21 = arith.constant 0 : index
    %c0_22 = arith.constant 0 : index
    %13 = vector.load %arg6[%c0_20, %c0_21, %c0_22] : memref<2x64x128xf32, #tpu.memory_space<vmem>>, vector<2x64x128xf32>
    tpu.vector_store %arg6[%c0_20, %c0_21, %c0_22], %12 {strides = array<i32>} : memref<2x64x128xf32, #tpu.memory_space<vmem>>, vector<2x64x128xf32>,
    %c0_23 = arith.constant 0 : index
    %c0_24 = arith.constant 0 : index
    %c0_25 = arith.constant 0 : index
    %14 = vector.load %arg7[%c0_23, %c0_24, %c0_25] : memref<2x64x128xf32, #tpu.memory_space<vmem>>, vector<2x64x128xf32>
    %15 = arith.maximumf %14, %10 : vector<2x64x128xf32>
    %c0_26 = arith.constant 0 : index
    %c0_27 = arith.constant 0 : index
    %c0_28 = arith.constant 0 : index
    %16 = vector.load %arg7[%c0_26, %c0_27, %c0_28] : memref<2x64x128xf32, #tpu.memory_space<vmem>>, vector<2x64x128xf32>
    tpu.vector_store %arg7[%c0_26, %c0_27, %c0_28], %15 {strides = array<i32>} : memref<2x64x128xf32, #tpu.memory_space<vmem>>, vector<2x64x128xf32>,
    %c0_i32_29 = arith.constant 0 : i32
    %17 = arith.cmpi eq, %arg1, %c0_i32_29 : i32
    %18 = arith.extui %17 : i1 to i32
    %c0_i32_30 = arith.constant 0 : i32
    %19 = arith.cmpi ne, %18, %c0_i32_30 : i32
    scf.if %19 {
      %c0_31 = arith.constant 0 : index
      %c0_32 = arith.constant 0 : index
      %c0_33 = arith.constant 0 : index
      %20 = vector.load %arg6[%c0_31, %c0_32, %c0_33] : memref<2x64x128xf32, #tpu.memory_space<vmem>>, vector<2x64x128xf32>
      %cst = arith.constant dense<0.000000e+00> : vector<2x64xf32>
      %21 = vector.multi_reduction <add>, %20, %cst [2] : vector<2x64x128xf32> to vector<2x64xf32>
      %cst_34 = arith.constant 3.906250e-03 : f32
      %22 = vector.broadcast %cst_34 : f32 to vector<2x64xf32>
      %23 = arith.mulf %21, %22 : vector<2x64xf32>
      %c0_35 = arith.constant 0 : index
      %c0_36 = arith.constant 0 : index
      %c0_37 = arith.constant 0 : index
      %24 = vector.load %arg7[%c0_35, %c0_36, %c0_37] : memref<2x64x128xf32, #tpu.memory_space<vmem>>, vector<2x64x128xf32>
      %cst_38 = arith.constant dense<0xFF800000> : vector<2x64xf32>
      %25 = vector.multi_reduction <maximumf>, %24, %cst_38 [2] : vector<2x64x128xf32> to vector<2x64xf32>
      %26 = tpu.concatenate %23, %25 in 0 : vector<2x64xf32>, vector<2x64xf32> -> vector<4x64xf32>
      %c0_39 = arith.constant 0 : index
      %c0_40 = arith.constant 0 : index
      %27 = vector.load %arg3[%c0_39, %c0_40] : memref<4x64xf32, #tpu.memory_space<vmem>>, vector<4x64xf32>
      %cst_41 = arith.constant dense<0.000000e+00> : vector<4x4xf32>
      %28 = tpu.matmul %26, %27, %cst_41 {dimension_numbers = #tpu.dot_dimension_numbers<[1], [1], [0], [0], [0, 0, 1, 0], [], []>} : vector<4x64xf32>, vector<4x64xf32>, vector<4x4xf32> -> vector<4x4xf32>
      %cst_42 = arith.constant 0.000000e+00 : f32
      %29 = vector.broadcast %cst_42 : f32 to vector<4x4xf32>
      %30 = arith.maximumf %28, %29 : vector<4x4xf32>
      %31 = vector.extract_strided_slice %30 {offsets = [0, 0], sizes = [2, 4], strides = [1, 1]} : vector<4x4xf32> to vector<2x4xf32>
      %32 = vector.extract_strided_slice %30 {offsets = [2, 0], sizes = [2, 4], strides = [1, 1]} : vector<4x4xf32> to vector<2x4xf32>
      %33 = arith.addf %31, %32 : vector<2x4xf32>
      %c0_43 = arith.constant 0 : index
      %c0_44 = arith.constant 0 : index
      %34 = vector.load %arg4[%c0_43, %c0_44] : memref<64x4xf32, #tpu.memory_space<vmem>>, vector<64x4xf32>
      %cst_45 = arith.constant dense<0.000000e+00> : vector<2x64xf32>
      %35 = tpu.matmul %33, %34, %cst_45 {dimension_numbers = #tpu.dot_dimension_numbers<[1], [1], [0], [0], [0, 0, 1, 0], [], []>} : vector<2x4xf32>, vector<64x4xf32>, vector<2x64xf32> -> vector<2x64xf32>
      %36 = arith.negf %35 : vector<2x64xf32>
      %37 = math.exp %36 : vector<2x64xf32>
      %cst_46 = arith.constant 1.000000e+00 : f32
      %38 = vector.broadcast %cst_46 : f32 to vector<2x64xf32>
      %39 = arith.addf %38, %37 : vector<2x64xf32>
      %40 = arith.divf %38, %39 : vector<2x64xf32>
      %c0_47 = arith.constant 0 : index
      %c0_48 = arith.constant 0 : index
      %41 = vector.load %arg5[%c0_47, %c0_48] : memref<2x64xf32, #tpu.memory_space<vmem>>, vector<2x64xf32>
      tpu.vector_store %arg5[%c0_47, %c0_48], %40 {strides = array<i32>} : memref<2x64xf32, #tpu.memory_space<vmem>>, vector<2x64xf32>,
    } else {
    }
    return
  }
  func.func @transform_0(%arg0: i32, %arg1: i32) -> (i32, i32, i32) {
    %c0_i32 = arith.constant 0 : i32
    %c0_i32_0 = arith.constant 0 : i32
    return %arg0, %c0_i32, %arg1 : i32, i32, i32
  }
  func.func @transform_1(%arg0: i32, %arg1: i32) -> (i32, i32) {
    %c0_i32 = arith.constant 0 : i32
    %c0_i32_0 = arith.constant 0 : i32
    %c0_i32_1 = arith.constant 0 : i32
    return %c0_i32, %c0_i32_0 : i32, i32
  }
  func.func @transform_2(%arg0: i32, %arg1: i32) -> (i32, i32) {
    %c0_i32 = arith.constant 0 : i32
    %c0_i32_0 = arith.constant 0 : i32
    %c0_i32_1 = arith.constant 0 : i32
    return %c0_i32, %c0_i32_0 : i32, i32
  }
  func.func @transform_3(%arg0: i32, %arg1: i32) -> (i32, i32) {
    %c0_i32 = arith.constant 0 : i32
    %c0_i32_0 = arith.constant 0 : i32
    return %arg0, %c0_i32 : i32, i32
  }
}

</mosaic_0001>

<llo_original>
// kernel: tpu_custom_call.1
$region0: #{tpu_custom_call.1}
  #allocation0 [shape = 'u32[]', space=smem, size = 0x4, offset = 0x4, fixed_abs, tag = 'smem constant byte address 0x4 - core index']
  #allocation1 [shape = 'u32[144,128]{1,0:T(1,128)}', space=vmem, size = 0x12000, scoped, tag = 'internal scratch']
  #allocation2 [shape = 'f32[2,64,128]{2,1,0:T(8,128)}', space=vmem, size = 0x10000, scoped, tag = 'scratch operand']
  #allocation3 [shape = 'f32[2,64,128]{2,1,0:T(8,128)}', space=vmem, size = 0x10000, scoped, tag = 'scratch operand']
  %s0 = inlined_call_operand.hbm [shape: f32[2,64,256], index: 0, kind: input, shape index: {}]
  %s1 = inlined_call_operand.vmem [shape: f32[4,64], index: 1, kind: input, shape index: {}]
  %s2 = inlined_call_operand.vmem [shape: f32[64,4], index: 2, kind: input, shape index: {}]
  %s3 = inlined_call_operand.hbm [shape: f32[2,64], index: 3, kind: output, shape index: {}]
  %s4 = sld [smem:[#allocation0]]
  $region34: #{tpu_custom_call.1} parent=0
    _
  %s6 = ssub.s32 1, %s4
  %s7 = scalar_select 0, %s6, %s4
  $region1: #{tpu_custom_call.1} parent=0
    #allocation4 [shape = 'u8[131072]{0}', space=vmem, size = 0x20000, scoped, tag = 'input window, operand 0, single buffered']
    #allocation5 [shape = 's32[1]{0}', space=sflag, size = 0x4, scoped, tag = 'scoped memory for tpu_custom_call.1']
    #allocation6 [shape = 's32[1]{0}', space=sflag, size = 0x4, scoped, tag = 'scoped memory for tpu_custom_call.1']
    #allocation7 [shape = 'u8[1024]{0}', space=vmem, size = 0x400, scoped, tag = 'output window, operand 0, single buffered']
    %8 = vsyncpa [#allocation5], 0
    %9 = vsyncpa [#allocation6], 0
    // Predicated region
    $region2: #{tpu_custom_call.1} parent=1 // pred_check
      _
    $region3: #{tpu_custom_call.1} parent=1 // pred_check_branch
      %11 = sbr.rel (0) target = $region5
    $region4: #{tpu_custom_call.1} parent=1 // pred_region
      %s13 = ssub.s32 4096, 4096
      %14 = vsyncadd [#allocation5], %s13
      %s15 = sshll.u32 [#allocation4], 4
      %s16 = int_to_ptr.vmem [resolvable:$true] %s15
      %21 = dma.hbm_to_vmem [thread:$0]  %s0, 4096, %s16, [#allocation5], 256, 256, 16
    $region5: #{tpu_custom_call.1} parent=1 // pred_fallthru
      _
    // Predicated region
    $region6: #{tpu_custom_call.1} parent=1 // pred_check
      _
    $region7: #{tpu_custom_call.1} parent=1 // pred_check_branch
      %23 = sbr.rel (0) target = $region9
    $region8: #{tpu_custom_call.1} parent=1 // pred_region
      _
    $region9: #{tpu_custom_call.1} parent=1 // pred_fallthru
      _
    // Predicated region
    $region10: #{tpu_custom_call.1} parent=1 // pred_check
      _
    $region11: #{tpu_custom_call.1} parent=1 // pred_check_branch
      %25 = sbr.rel (0) target = $region13
    $region12: #{tpu_custom_call.1} parent=1 // pred_region
      _
    $region13: #{tpu_custom_call.1} parent=1 // pred_fallthru
      _
    // Predicated region
    $region14: #{tpu_custom_call.1} parent=1 // pred_check
      _
    $region15: #{tpu_custom_call.1} parent=1 // pred_check_branch
      %27 = sbr.rel (0) target = $region17
    $region16: #{tpu_custom_call.1} parent=1 // pred_region
      %28 = dma.done [#allocation5], 4096
    $region17: #{tpu_custom_call.1} parent=1 // pred_fallthru
      _
    %p29 = scmp.eq.s32.totalorder 0, 0
    // Predicated region
    $region18: #{tpu_custom_call.1} parent=1 // pred_check
      %p30 = pneg %p29
    $region19: #{tpu_custom_call.1} parent=1 // pred_check_branch
      %32 = sbr.rel (%p30) target = $region21
    $region20: #{tpu_custom_call.1} parent=1 // pred_region
      %33 = vst [vmem:[#allocation2] sm:$0xff] 0.0
      %34 = vst [vmem:[#allocation2 + $0x8] sm:$0xff] 0.0
      %35 = vst [vmem:[#allocation2 + $0x10] sm:$0xff] 0.0
      %36 = vst [vmem:[#allocation2 + $0x18] sm:$0xff] 0.0
      %37 = vst [vmem:[#allocation2 + $0x20] sm:$0xff] 0.0
      %38 = vst [vmem:[#allocation2 + $0x28] sm:$0xff] 0.0
      %39 = vst [vmem:[#allocation2 + $0x30] sm:$0xff] 0.0
      %40 = vst [vmem:[#allocation2 + $0x38] sm:$0xff] 0.0
      %41 = vst [vmem:[#allocation2 + $0x40] sm:$0xff] 0.0
      %42 = vst [vmem:[#allocation2 + $0x48] sm:$0xff] 0.0
      %43 = vst [vmem:[#allocation2 + $0x50] sm:$0xff] 0.0
      %44 = vst [vmem:[#allocation2 + $0x58] sm:$0xff] 0.0
      %45 = vst [vmem:[#allocation2 + $0x60] sm:$0xff] 0.0
      %46 = vst [vmem:[#allocation2 + $0x68] sm:$0xff] 0.0
      %47 = vst [vmem:[#allocation2 + $0x70] sm:$0xff] 0.0
      %48 = vst [vmem:[#allocation2 + $0x78] sm:$0xff] 0.0
      %49 = vst [vmem:[#allocation3] sm:$0xff] -inf
      %50 = vst [vmem:[#allocation3 + $0x8] sm:$0xff] -inf
      %51 = vst [vmem:[#allocation3 + $0x10] sm:$0xff] -inf
      %52 = vst [vmem:[#allocation3 + $0x18] sm:$0xff] -inf
      %53 = vst [vmem:[#allocation3 + $0x20] sm:$0xff] -inf
      %54 = vst [vmem:[#allocation3 + $0x28] sm:$0xff] -inf
      %55 = vst [vmem:[#allocation3 + $0x30] sm:$0xff] -inf
      %56 = vst [vmem:[#allocation3 + $0x38] sm:$0xff] -inf
      %57 = vst [vmem:[#allocation3 + $0x40] sm:$0xff] -inf
      %58 = vst [vmem:[#allocation3 + $0x48] sm:$0xff] -inf
      %59 = vst [vmem:[#allocation3 + $0x50] sm:$0xff] -inf
      %60 = vst [vmem:[#allocation3 + $0x58] sm:$0xff] -inf
      %61 = vst [vmem:[#allocation3 + $0x60] sm:$0xff] -inf
      %62 = vst [vmem:[#allocation3 + $0x68] sm:$0xff] -inf
      %63 = vst [vmem:[#allocation3 + $0x70] sm:$0xff] -inf
      %64 = vst [vmem:[#allocation3 + $0x78] sm:$0xff] -inf
    $region21: #{tpu_custom_call.1} parent=1 // pred_fallthru
      _
    %v65 = vld [vmem:[#allocation4] sm:$0xff]
    %v66 = vld [vmem:[#allocation4 + $0x10] sm:$0xff]
    %v67 = vld [vmem:[#allocation4 + $0x20] sm:$0xff]
    %v68 = vld [vmem:[#allocation4 + $0x30] sm:$0xff]
    %v69 = vld [vmem:[#allocation4 + $0x40] sm:$0xff]
    %v70 = vld [vmem:[#allocation4 + $0x50] sm:$0xff]
    %v71 = vld [vmem:[#allocation4 + $0x60] sm:$0xff]
    %v72 = vld [vmem:[#allocation4 + $0x70] sm:$0xff]
    %v73 = vld [vmem:[#allocation4 + $0x80] sm:$0xff]
    %v74 = vld [vmem:[#allocation4 + $0x90] sm:$0xff]
    %v75 = vld [vmem:[#allocation4 + $0xa0] sm:$0xff]
    %v76 = vld [vmem:[#allocation4 + $0xb0] sm:$0xff]
    %v77 = vld [vmem:[#allocation4 + $0xc0] sm:$0xff]
    %v78 = vld [vmem:[#allocation4 + $0xd0] sm:$0xff]
    %v79 = vld [vmem:[#allocation4 + $0xe0] sm:$0xff]
    %v80 = vld [vmem:[#allocation4 + $0xf0] sm:$0xff]
    %v81 = vld [vmem:[#allocation2] sm:$0xff]
    %v82 = vld [vmem:[#allocation2 + $0x8] sm:$0xff]
    %v83 = vld [vmem:[#allocation2 + $0x10] sm:$0xff]
    %v84 = vld [vmem:[#allocation2 + $0x18] sm:$0xff]
    %v85 = vld [vmem:[#allocation2 + $0x20] sm:$0xff]
    %v86 = vld [vmem:[#allocation2 + $0x28] sm:$0xff]
    %v87 = vld [vmem:[#allocation2 + $0x30] sm:$0xff]
    %v88 = vld [vmem:[#allocation2 + $0x38] sm:$0xff]
    %v89 = vld [vmem:[#allocation2 + $0x40] sm:$0xff]
    %v90 = vld [vmem:[#allocation2 + $0x48] sm:$0xff]
    %v91 = vld [vmem:[#allocation2 + $0x50] sm:$0xff]
    %v92 = vld [vmem:[#allocation2 + $0x58] sm:$0xff]
    %v93 = vld [vmem:[#allocation2 + $0x60] sm:$0xff]
    %v94 = vld [vmem:[#allocation2 + $0x68] sm:$0xff]
    %v95 = vld [vmem:[#allocation2 + $0x70] sm:$0xff]
    %v96 = vld [vmem:[#allocation2 + $0x78] sm:$0xff]
    %v97 = vadd.f32 %v81, %v65
    %v98 = vadd.f32 %v82, %v66
    %v99 = vadd.f32 %v83, %v67
    %v100 = vadd.f32 %v84, %v68
    %v101 = vadd.f32 %v85, %v69
    %v102 = vadd.f32 %v86, %v70
    %v103 = vadd.f32 %v87, %v71
    %v104 = vadd.f32 %v88, %v72
    %v105 = vadd.f32 %v89, %v73
    %v106 = vadd.f32 %v90, %v74
    %v107 = vadd.f32 %v91, %v75
    %v108 = vadd.f32 %v92, %v76
    %v109 = vadd.f32 %v93, %v77
    %v110 = vadd.f32 %v94, %v78
    %v111 = vadd.f32 %v95, %v79
    %v112 = vadd.f32 %v96, %v80
    %113 = vst [vmem:[#allocation2] sm:$0xff] %v97
    %114 = vst [vmem:[#allocation2 + $0x8] sm:$0xff] %v98
    %115 = vst [vmem:[#allocation2 + $0x10] sm:$0xff] %v99
    %116 = vst [vmem:[#allocation2 + $0x18] sm:$0xff] %v100
    %117 = vst [vmem:[#allocation2 + $0x20] sm:$0xff] %v101
    %118 = vst [vmem:[#allocation2 + $0x28] sm:$0xff] %v102
    %119 = vst [vmem:[#allocation2 + $0x30] sm:$0xff] %v103
    %120 = vst [vmem:[#allocation2 + $0x38] sm:$0xff] %v104
    %121 = vst [vmem:[#allocation2 + $0x40] sm:$0xff] %v105
    %122 = vst [vmem:[#allocation2 + $0x48] sm:$0xff] %v106
    %123 = vst [vmem:[#allocation2 + $0x50] sm:$0xff] %v107
    %124 = vst [vmem:[#allocation2 + $0x58] sm:$0xff] %v108
    %125 = vst [vmem:[#allocation2 + $0x60] sm:$0xff] %v109
    %126 = vst [vmem:[#allocation2 + $0x68] sm:$0xff] %v110
    %127 = vst [vmem:[#allocation2 + $0x70] sm:$0xff] %v111
    %128 = vst [vmem:[#allocation2 + $0x78] sm:$0xff] %v112
    %v129 = vld [vmem:[#allocation3] sm:$0xff]
    %v130 = vld [vmem:[#allocation3 + $0x8] sm:$0xff]
    %v131 = vld [vmem:[#allocation3 + $0x10] sm:$0xff]
    %v132 = vld [vmem:[#allocation3 + $0x18] sm:$0xff]
    %v133 = vld [vmem:[#allocation3 + $0x20] sm:$0xff]
    %v134 = vld [vmem:[#allocation3 + $0x28] sm:$0xff]
    %v135 = vld [vmem:[#allocation3 + $0x30] sm:$0xff]
    %v136 = vld [vmem:[#allocation3 + $0x38] sm:$0xff]
    %v137 = vld [vmem:[#allocation3 + $0x40] sm:$0xff]
    %v138 = vld [vmem:[#allocation3 + $0x48] sm:$0xff]
    %v139 = vld [vmem:[#allocation3 + $0x50] sm:$0xff]
    %v140 = vld [vmem:[#allocation3 + $0x58] sm:$0xff]
    %v141 = vld [vmem:[#allocation3 + $0x60] sm:$0xff]
    %v142 = vld [vmem:[#allocation3 + $0x68] sm:$0xff]
    %v143 = vld [vmem:[#allocation3 + $0x70] sm:$0xff]
    %v144 = vld [vmem:[#allocation3 + $0x78] sm:$0xff]
    %v145 = vmax.f32 %v129, %v65
    %v146 = vmax.f32 %v130, %v66
    %v147 = vmax.f32 %v131, %v67
    %v148 = vmax.f32 %v132, %v68
    %v149 = vmax.f32 %v133, %v69
    %v150 = vmax.f32 %v134, %v70
    %v151 = vmax.f32 %v135, %v71
    %v152 = vmax.f32 %v136, %v72
    %v153 = vmax.f32 %v137, %v73
    %v154 = vmax.f32 %v138, %v74
    %v155 = vmax.f32 %v139, %v75
    %v156 = vmax.f32 %v140, %v76
    %v157 = vmax.f32 %v141, %v77
    %v158 = vmax.f32 %v142, %v78
    %v159 = vmax.f32 %v143, %v79
    %v160 = vmax.f32 %v144, %v80
    %161 = vst [vmem:[#allocation3] sm:$0xff] %v145
    %162 = vst [vmem:[#allocation3 + $0x8] sm:$0xff] %v146
    %163 = vst [vmem:[#allocation3 + $0x10] sm:$0xff] %v147
    %164 = vst [vmem:[#allocation3 + $0x18] sm:$0xff] %v148
    %165 = vst [vmem:[#allocation3 + $0x20] sm:$0xff] %v149
    %166 = vst [vmem:[#allocation3 + $0x28] sm:$0xff] %v150
    %167 = vst [vmem:[#allocation3 + $0x30] sm:$0xff] %v151
    %168 = vst [vmem:[#allocation3 + $0x38] sm:$0xff] %v152
    %169 = vst [vmem:[#allocation3 + $0x40] sm:$0xff] %v153
    %170 = vst [vmem:[#allocation3 + $0x48] sm:$0xff] %v154
    %171 = vst [vmem:[#allocation3 + $0x50] sm:$0xff] %v155
    %172 = vst [vmem:[#allocation3 + $0x58] sm:$0xff] %v156
    %173 = vst [vmem:[#allocation3 + $0x60] sm:$0xff] %v157
    %174 = vst [vmem:[#allocation3 + $0x68] sm:$0xff] %v158
    %175 = vst [vmem:[#allocation3 + $0x70] sm:$0xff] %v159
    %176 = vst [vmem:[#allocation3 + $0x78] sm:$0xff] %v160
    %v177 = vld [vmem:[#allocation4 + $0x8] sm:$0xff]
    %v178 = vld [vmem:[#allocation4 + $0x18] sm:$0xff]
    %v179 = vld [vmem:[#allocation4 + $0x28] sm:$0xff]
    %v180 = vld [vmem:[#allocation4 + $0x38] sm:$0xff]
    %v181 = vld [vmem:[#allocation4 + $0x48] sm:$0xff]
    %v182 = vld [vmem:[#allocation4 + $0x58] sm:$0xff]
    %v183 = vld [vmem:[#allocation4 + $0x68] sm:$0xff]
    %v184 = vld [vmem:[#allocation4 + $0x78] sm:$0xff]
    %v185 = vld [vmem:[#allocation4 + $0x88] sm:$0xff]
    %v186 = vld [vmem:[#allocation4 + $0x98] sm:$0xff]
    %v187 = vld [vmem:[#allocation4 + $0xa8] sm:$0xff]
    %v188 = vld [vmem:[#allocation4 + $0xb8] sm:$0xff]
    %v189 = vld [vmem:[#allocation4 + $0xc8] sm:$0xff]
    %v190 = vld [vmem:[#allocation4 + $0xd8] sm:$0xff]
    %v191 = vld [vmem:[#allocation4 + $0xe8] sm:$0xff]
    %v192 = vld [vmem:[#allocation4 + $0xf8] sm:$0xff]
    %v193 = vld [vmem:[#allocation2] sm:$0xff]
    %v194 = vld [vmem:[#allocation2 + $0x8] sm:$0xff]
    %v195 = vld [vmem:[#allocation2 + $0x10] sm:$0xff]
    %v196 = vld [vmem:[#allocation2 + $0x18] sm:$0xff]
    %v197 = vld [vmem:[#allocation2 + $0x20] sm:$0xff]
    %v198 = vld [vmem:[#allocation2 + $0x28] sm:$0xff]
    %v199 = vld [vmem:[#allocation2 + $0x30] sm:$0xff]
    %v200 = vld [vmem:[#allocation2 + $0x38] sm:$0xff]
    %v201 = vld [vmem:[#allocation2 + $0x40] sm:$0xff]
    %v202 = vld [vmem:[#allocation2 + $0x48] sm:$0xff]
    %v203 = vld [vmem:[#allocation2 + $0x50] sm:$0xff]
    %v204 = vld [vmem:[#allocation2 + $0x58] sm:$0xff]
    %v205 = vld [vmem:[#allocation2 + $0x60] sm:$0xff]
    %v206 = vld [vmem:[#allocation2 + $0x68] sm:$0xff]
    %v207 = vld [vmem:[#allocation2 + $0x70] sm:$0xff]
    %v208 = vld [vmem:[#allocation2 + $0x78] sm:$0xff]
    %v209 = vadd.f32 %v193, %v177
    %v210 = vadd.f32 %v194, %v178
    %v211 = vadd.f32 %v195, %v179
    %v212 = vadd.f32 %v196, %v180
    %v213 = vadd.f32 %v197, %v181
    %v214 = vadd.f32 %v198, %v182
    %v215 = vadd.f32 %v199, %v183
    %v216 = vadd.f32 %v200, %v184
    %v217 = vadd.f32 %v201, %v185
    %v218 = vadd.f32 %v202, %v186
    %v219 = vadd.f32 %v203, %v187
    %v220 = vadd.f32 %v204, %v188
    %v221 = vadd.f32 %v205, %v189
    %v222 = vadd.f32 %v206, %v190
    %v223 = vadd.f32 %v207, %v191
    %v224 = vadd.f32 %v208, %v192
    %225 = vst [vmem:[#allocation2] sm:$0xff] %v209
    %226 = vst [vmem:[#allocation2 + $0x8] sm:$0xff] %v210
    %227 = vst [vmem:[#allocation2 + $0x10] sm:$0xff] %v211
    %228 = vst [vmem:[#allocation2 + $0x18] sm:$0xff] %v212
    %229 = vst [vmem:[#allocation2 + $0x20] sm:$0xff] %v213
    %230 = vst [vmem:[#allocation2 + $0x28] sm:$0xff] %v214
    %231 = vst [vmem:[#allocation2 + $0x30] sm:$0xff] %v215
    %232 = vst [vmem:[#allocation2 + $0x38] sm:$0xff] %v216
    %233 = vst [vmem:[#allocation2 + $0x40] sm:$0xff] %v217
    %234 = vst [vmem:[#allocation2 + $0x48] sm:$0xff] %v218
    %235 = vst [vmem:[#allocation2 + $0x50] sm:$0xff] %v219
    %236 = vst [vmem:[#allocation2 + $0x58] sm:$0xff] %v220
    %237 = vst [vmem:[#allocation2 + $0x60] sm:$0xff] %v221
    %238 = vst [vmem:[#allocation2 + $0x68] sm:$0xff] %v222
    %239 = vst [vmem:[#allocation2 + $0x70] sm:$0xff] %v223
    %240 = vst [vmem:[#allocation2 + $0x78] sm:$0xff] %v224
    %v241 = vld [vmem:[#allocation3] sm:$0xff]
    %v242 = vld [vmem:[#allocation3 + $0x8] sm:$0xff]
    %v243 = vld [vmem:[#allocation3 + $0x10] sm:$0xff]
    %v244 = vld [vmem:[#allocation3 + $0x18] sm:$0xff]
    %v245 = vld [vmem:[#allocation3 + $0x20] sm:$0xff]
    %v246 = vld [vmem:[#allocation3 + $0x28] sm:$0xff]
    %v247 = vld [vmem:[#allocation3 + $0x30] sm:$0xff]
    %v248 = vld [vmem:[#allocation3 + $0x38] sm:$0xff]
    %v249 = vld [vmem:[#allocation3 + $0x40] sm:$0xff]
    %v250 = vld [vmem:[#allocation3 + $0x48] sm:$0xff]
    %v251 = vld [vmem:[#allocation3 + $0x50] sm:$0xff]
    %v252 = vld [vmem:[#allocation3 + $0x58] sm:$0xff]
    %v253 = vld [vmem:[#allocation3 + $0x60] sm:$0xff]
    %v254 = vld [vmem:[#allocation3 + $0x68] sm:$0xff]
    %v255 = vld [vmem:[#allocation3 + $0x70] sm:$0xff]
    %v256 = vld [vmem:[#allocation3 + $0x78] sm:$0xff]
    %v257 = vmax.f32 %v241, %v177
    %v258 = vmax.f32 %v242, %v178
    %v259 = vmax.f32 %v243, %v179
    %v260 = vmax.f32 %v244, %v180
    %v261 = vmax.f32 %v245, %v181
    %v262 = vmax.f32 %v246, %v182
    %v263 = vmax.f32 %v247, %v183
    %v264 = vmax.f32 %v248, %v184
    %v265 = vmax.f32 %v249, %v185
    %v266 = vmax.f32 %v250, %v186
    %v267 = vmax.f32 %v251, %v187
    %v268 = vmax.f32 %v252, %v188
    %v269 = vmax.f32 %v253, %v189
    %v270 = vmax.f32 %v254, %v190
    %v271 = vmax.f32 %v255, %v191
    %v272 = vmax.f32 %v256, %v192
    %273 = vst [vmem:[#allocation3] sm:$0xff] %v257
    %274 = vst [vmem:[#allocation3 + $0x8] sm:$0xff] %v258
    %275 = vst [vmem:[#allocation3 + $0x10] sm:$0xff] %v259
    %276 = vst [vmem:[#allocation3 + $0x18] sm:$0xff] %v260
    %277 = vst [vmem:[#allocation3 + $0x20] sm:$0xff] %v261
    %278 = vst [vmem:[#allocation3 + $0x28] sm:$0xff] %v262
    %279 = vst [vmem:[#allocation3 + $0x30] sm:$0xff] %v263
    %280 = vst [vmem:[#allocation3 + $0x38] sm:$0xff] %v264
    %281 = vst [vmem:[#allocation3 + $0x40] sm:$0xff] %v265
    %282 = vst [vmem:[#allocation3 + $0x48] sm:$0xff] %v266
    %283 = vst [vmem:[#allocation3 + $0x50] sm:$0xff] %v267
    %284 = vst [vmem:[#allocation3 + $0x58] sm:$0xff] %v268
    %285 = vst [vmem:[#allocation3 + $0x60] sm:$0xff] %v269
    %286 = vst [vmem:[#allocation3 + $0x68] sm:$0xff] %v270
    %287 = vst [vmem:[#allocation3 + $0x70] sm:$0xff] %v271
    %288 = vst [vmem:[#allocation3 + $0x78] sm:$0xff] %v272
    // Predicated region
    $region22: #{tpu_custom_call.1} parent=1 // pred_check
      %p289 = pneg %p29
    $region23: #{tpu_custom_call.1} parent=1 // pred_check_branch
      %291 = sbr.rel (%p289) target = $region25
    $region24: #{tpu_custom_call.1} parent=1 // pred_region
      %v292 = vld [vmem:[#allocation2] sm:$0xff]
      %v293 = vld [vmem:[#allocation2 + $0x8] sm:$0xff]
      %v294 = vld [vmem:[#allocation2 + $0x10] sm:$0xff]
      %v295 = vld [vmem:[#allocation2 + $0x18] sm:$0xff]
      %v296 = vld [vmem:[#allocation2 + $0x20] sm:$0xff]
      %v297 = vld [vmem:[#allocation2 + $0x28] sm:$0xff]
      %v298 = vld [vmem:[#allocation2 + $0x30] sm:$0xff]
      %v299 = vld [vmem:[#allocation2 + $0x38] sm:$0xff]
      %v300 = vld [vmem:[#allocation2 + $0x40] sm:$0xff]
      %v301 = vld [vmem:[#allocation2 + $0x48] sm:$0xff]
      %v302 = vld [vmem:[#allocation2 + $0x50] sm:$0xff]
      %v303 = vld [vmem:[#allocation2 + $0x58] sm:$0xff]
      %v304 = vld [vmem:[#allocation2 + $0x60] sm:$0xff]
      %v305 = vld [vmem:[#allocation2 + $0x68] sm:$0xff]
      %v306 = vld [vmem:[#allocation2 + $0x70] sm:$0xff]
      %v307 = vld [vmem:[#allocation2 + $0x78] sm:$0xff]
      %308 = vadd.xlane.f32.xlu0 %v292
      %v309 = vpop.xlane.xlu0 %308
      %310 = vadd.xlane.f32.xlu0 %v293
      %v311 = vpop.xlane.xlu0 %310
      %312 = vadd.xlane.f32.xlu0 %v294
      %v313 = vpop.xlane.xlu0 %312
      %314 = vadd.xlane.f32.xlu0 %v295
      %v315 = vpop.xlane.xlu0 %314
      %316 = vadd.xlane.f32.xlu0 %v296
      %v317 = vpop.xlane.xlu0 %316
      %318 = vadd.xlane.f32.xlu0 %v297
      %v319 = vpop.xlane.xlu0 %318
      %320 = vadd.xlane.f32.xlu0 %v298
      %v321 = vpop.xlane.xlu0 %320
      %322 = vadd.xlane.f32.xlu0 %v299
      %v323 = vpop.xlane.xlu0 %322
      %324 = vadd.xlane.f32.xlu0 %v300
      %v325 = vpop.xlane.xlu0 %324
      %326 = vadd.xlane.f32.xlu0 %v301
      %v327 = vpop.xlane.xlu0 %326
      %328 = vadd.xlane.f32.xlu0 %v302
      %v329 = vpop.xlane.xlu0 %328
      %330 = vadd.xlane.f32.xlu0 %v303
      %v331 = vpop.xlane.xlu0 %330
      %332 = vadd.xlane.f32.xlu0 %v304
      %v333 = vpop.xlane.xlu0 %332
      %334 = vadd.xlane.f32.xlu0 %v305
      %v335 = vpop.xlane.xlu0 %334
      %336 = vadd.xlane.f32.xlu0 %v306
      %v337 = vpop.xlane.xlu0 %336
      %338 = vadd.xlane.f32.xlu0 %v307
      %v339 = vpop.xlane.xlu0 %338
      %v340 = vmul.f32 %v309, 0.00390625
      %v341 = vmul.f32 %v311, 0.00390625
      %v342 = vmul.f32 %v313, 0.00390625
      %v343 = vmul.f32 %v315, 0.00390625
      %v344 = vmul.f32 %v317, 0.00390625
      %v345 = vmul.f32 %v319, 0.00390625
      %v346 = vmul.f32 %v321, 0.00390625
      %v347 = vmul.f32 %v323, 0.00390625
      %v348 = vmul.f32 %v325, 0.00390625
      %v349 = vmul.f32 %v327, 0.00390625
      %v350 = vmul.f32 %v329, 0.00390625
      %v351 = vmul.f32 %v331, 0.00390625
      %v352 = vmul.f32 %v333, 0.00390625
      %v353 = vmul.f32 %v335, 0.00390625
      %v354 = vmul.f32 %v337, 0.00390625
      %v355 = vmul.f32 %v339, 0.00390625
      %v356 = vld [vmem:[#allocation3] sm:$0xff]
      %v357 = vld [vmem:[#allocation3 + $0x8] sm:$0xff]
      %v358 = vld [vmem:[#allocation3 + $0x10] sm:$0xff]
      %v359 = vld [vmem:[#allocation3 + $0x18] sm:$0xff]
      %v360 = vld [vmem:[#allocation3 + $0x20] sm:$0xff]
      %v361 = vld [vmem:[#allocation3 + $0x28] sm:$0xff]
      %v362 = vld [vmem:[#allocation3 + $0x30] sm:$0xff]
      %v363 = vld [vmem:[#allocation3 + $0x38] sm:$0xff]
      %v364 = vld [vmem:[#allocation3 + $0x40] sm:$0xff]
      %v365 = vld [vmem:[#allocation3 + $0x48] sm:$0xff]
      %v366 = vld [vmem:[#allocation3 + $0x50] sm:$0xff]
      %v367 = vld [vmem:[#allocation3 + $0x58] sm:$0xff]
      %v368 = vld [vmem:[#allocation3 + $0x60] sm:$0xff]
      %v369 = vld [vmem:[#allocation3 + $0x68] sm:$0xff]
      %v370 = vld [vmem:[#allocation3 + $0x70] sm:$0xff]
      %v371 = vld [vmem:[#allocation3 + $0x78] sm:$0xff]
      %372 = vmax.xlane.f32.xlu0 %v356
      %v373 = vpop.xlane.xlu0 %372
      %374 = vmax.xlane.f32.xlu0 %v357
      %v375 = vpop.xlane.xlu0 %374
      %376 = vmax.xlane.f32.xlu0 %v358
      %v377 = vpop.xlane.xlu0 %376
      %378 = vmax.xlane.f32.xlu0 %v359
      %v379 = vpop.xlane.xlu0 %378
      %380 = vmax.xlane.f32.xlu0 %v360
      %v381 = vpop.xlane.xlu0 %380
      %382 = vmax.xlane.f32.xlu0 %v361
      %v383 = vpop.xlane.xlu0 %382
      %384 = vmax.xlane.f32.xlu0 %v362
      %v385 = vpop.xlane.xlu0 %384
      %386 = vmax.xlane.f32.xlu0 %v363
      %v387 = vpop.xlane.xlu0 %386
      %388 = vmax.xlane.f32.xlu0 %v364
      %v389 = vpop.xlane.xlu0 %388
      %390 = vmax.xlane.f32.xlu0 %v365
      %v391 = vpop.xlane.xlu0 %390
      %392 = vmax.xlane.f32.xlu0 %v366
      %v393 = vpop.xlane.xlu0 %392
      %394 = vmax.xlane.f32.xlu0 %v367
      %v395 = vpop.xlane.xlu0 %394
      %396 = vmax.xlane.f32.xlu0 %v368
      %v397 = vpop.xlane.xlu0 %396
      %398 = vmax.xlane.f32.xlu0 %v369
      %v399 = vpop.xlane.xlu0 %398
      %400 = vmax.xlane.f32.xlu0 %v370
      %v401 = vpop.xlane.xlu0 %400
      %402 = vmax.xlane.f32.xlu0 %v371
      %v403 = vpop.xlane.xlu0 %402
      %v420 = vlaneseq
      %v421 = vand.u32 %v420, 127
      %v422 = vlaneseq
      %v423 = vshrl.u32 %v422, 7
      %v424 = vsub.s32 %v421, %v423
      %v425 = vrot.slane %v340, %v424
      %v426 = vadd.s32 %v421, 4294967288
      %v427 = vlaneseq
      %v428 = vshrl.u32 %v427, 7
      %v429 = vsub.s32 %v426, %v428
      %v430 = vrot.slane %v341, %v429
      %vm431 = vcmask 130112
      %v432 = vsel %vm431, %v430, %v425
      %v433 = vadd.s32 %v421, 4294967280
      %v434 = vlaneseq
      %v435 = vshrl.u32 %v434, 7
      %v436 = vsub.s32 %v433, %v435
      %v437 = vrot.slane %v342, %v436
      %vm438 = vcmask 195712
      %v439 = vsel %vm438, %v437, %v432
      %v440 = vadd.s32 %v421, 4294967272
      %v441 = vlaneseq
      %v442 = vshrl.u32 %v441, 7
      %v443 = vsub.s32 %v440, %v442
      %v444 = vrot.slane %v343, %v443
      %vm445 = vcmask 261312
      %v446 = vsel %vm445, %v444, %v439
      %v447 = vadd.s32 %v421, 4294967264
      %v448 = vlaneseq
      %v449 = vshrl.u32 %v448, 7
      %v450 = vsub.s32 %v447, %v449
      %v451 = vrot.slane %v344, %v450
      %vm452 = vcmask 326912
      %v453 = vsel %vm452, %v451, %v446
      %v454 = vadd.s32 %v421, 4294967256
      %v455 = vlaneseq
      %v456 = vshrl.u32 %v455, 7
      %v457 = vsub.s32 %v454, %v456
      %v458 = vrot.slane %v345, %v457
      %vm459 = vcmask 392512
      %v460 = vsel %vm459, %v458, %v453
      %v461 = vadd.s32 %v421, 4294967248
      %v462 = vlaneseq
      %v463 = vshrl.u32 %v462, 7
      %v464 = vsub.s32 %v461, %v463
      %v465 = vrot.slane %v346, %v464
      %vm466 = vcmask 458112
      %v467 = vsel %vm466, %v465, %v460
      %v468 = vadd.s32 %v421, 4294967240
      %v469 = vlaneseq
      %v470 = vshrl.u32 %v469, 7
      %v471 = vsub.s32 %v468, %v470
      %v472 = vrot.slane %v347, %v471
      %vm473 = vcmask 523712
      %v474 = vsel %vm473, %v472, %v467
      %v475 = vlaneseq
      %v476 = vshrl.u32 %v475, 7
      %v477 = vsub.s32 %v421, %v476
      %v478 = vrot.slane %v348, %v477
      %v479 = vlaneseq
      %v480 = vshrl.u32 %v479, 7
      %v481 = vsub.s32 %v426, %v480
      %v482 = vrot.slane %v349, %v481
      %v483 = vsel %vm431, %v482, %v478
      %v484 = vlaneseq
      %v485 = vshrl.u32 %v484, 7
      %v486 = vsub.s32 %v433, %v485
      %v487 = vrot.slane %v350, %v486
      %v488 = vsel %vm438, %v487, %v483
      %v489 = vlaneseq
      %v490 = vshrl.u32 %v489, 7
      %v491 = vsub.s32 %v440, %v490
      %v492 = vrot.slane %v351, %v491
      %v493 = vsel %vm445, %v492, %v488
      %v494 = vlaneseq
      %v495 = vshrl.u32 %v494, 7
      %v496 = vsub.s32 %v447, %v495
      %v497 = vrot.slane %v352, %v496
      %v498 = vsel %vm452, %v497, %v493
      %v499 = vlaneseq
      %v500 = vshrl.u32 %v499, 7
      %v501 = vsub.s32 %v454, %v500
      %v502 = vrot.slane %v353, %v501
      %v503 = vsel %vm459, %v502, %v498
      %v504 = vlaneseq
      %v505 = vshrl.u32 %v504, 7
      %v506 = vsub.s32 %v461, %v505
      %v507 = vrot.slane %v354, %v506
      %v508 = vsel %vm466, %v507, %v503
      %v509 = vlaneseq
      %v510 = vshrl.u32 %v509, 7
      %v511 = vsub.s32 %v468, %v510
      %v512 = vrot.slane %v355, %v511
      %v513 = vsel %vm473, %v512, %v508
      %vm514 = vcmask 1041409
      %v515 = vsel %vm514, %v513, %v474
      %v533 = vlaneseq
      %v534 = vshrl.u32 %v533, 7
      %v535 = vsub.s32 %v421, %v534
      %v536 = vrot.slane %v373, %v535
      %v537 = vlaneseq
      %v538 = vshrl.u32 %v537, 7
      %v539 = vsub.s32 %v426, %v538
      %v540 = vrot.slane %v375, %v539
      %v541 = vsel %vm431, %v540, %v536
      %v542 = vlaneseq
      %v543 = vshrl.u32 %v542, 7
      %v544 = vsub.s32 %v433, %v543
      %v545 = vrot.slane %v377, %v544
      %v546 = vsel %vm438, %v545, %v541
      %v547 = vlaneseq
      %v548 = vshrl.u32 %v547, 7
      %v549 = vsub.s32 %v440, %v548
      %v550 = vrot.slane %v379, %v549
      %v551 = vsel %vm445, %v550, %v546
      %v552 = vlaneseq
      %v553 = vshrl.u32 %v552, 7
      %v554 = vsub.s32 %v447, %v553
      %v555 = vrot.slane %v381, %v554
      %v556 = vsel %vm452, %v555, %v551
      %v557 = vlaneseq
      %v558 = vshrl.u32 %v557, 7
      %v559 = vsub.s32 %v454, %v558
      %v560 = vrot.slane %v383, %v559
      %v561 = vsel %vm459, %v560, %v556
      %v562 = vlaneseq
      %v563 = vshrl.u32 %v562, 7
      %v564 = vsub.s32 %v461, %v563
      %v565 = vrot.slane %v385, %v564
      %v566 = vsel %vm466, %v565, %v561
      %v567 = vlaneseq
      %v568 = vshrl.u32 %v567, 7
      %v569 = vsub.s32 %v468, %v568
      %v570 = vrot.slane %v387, %v569
      %v571 = vsel %vm473, %v570, %v566
      %v572 = vlaneseq
      %v573 = vshrl.u32 %v572, 7
      %v574 = vsub.s32 %v421, %v573
      %v575 = vrot.slane %v389, %v574
      %v576 = vlaneseq
      %v577 = vshrl.u32 %v576, 7
      %v578 = vsub.s32 %v426, %v577
      %v579 = vrot.slane %v391, %v578
      %v580 = vsel %vm431, %v579, %v575
      %v581 = vlaneseq
      %v582 = vshrl.u32 %v581, 7
      %v583 = vsub.s32 %v433, %v582
      %v584 = vrot.slane %v393, %v583
      %v585 = vsel %vm438, %v584, %v580
      %v586 = vlaneseq
      %v587 = vshrl.u32 %v586, 7
      %v588 = vsub.s32 %v440, %v587
      %v589 = vrot.slane %v395, %v588
      %v590 = vsel %vm445, %v589, %v585
      %v591 = vlaneseq
      %v592 = vshrl.u32 %v591, 7
      %v593 = vsub.s32 %v447, %v592
      %v594 = vrot.slane %v397, %v593
      %v595 = vsel %vm452, %v594, %v590
      %v596 = vlaneseq
      %v597 = vshrl.u32 %v596, 7
      %v598 = vsub.s32 %v454, %v597
      %v599 = vrot.slane %v399, %v598
      %v600 = vsel %vm459, %v599, %v595
      %v601 = vlaneseq
      %v602 = vshrl.u32 %v601, 7
      %v603 = vsub.s32 %v461, %v602
      %v604 = vrot.slane %v401, %v603
      %v605 = vsel %vm466, %v604, %v600
      %v606 = vlaneseq
      %v607 = vshrl.u32 %v606, 7
      %v608 = vsub.s32 %v468, %v607
      %v609 = vrot.slane %v403, %v608
      %v610 = vsel %vm473, %v609, %v605
      %vm611 = vcmask 1043459
      %v612 = vsel %vm611, %v610, %v571
      %vm614 = vcmask 1041408
      %v615 = vsel %vm614, %v515, %v612
      %v616 = vld [vmem:[%s1] sm:$0xf]
      %vm617 = vcmask 523264
      %v619 = vsel %vm617, %v615, 0
      %v622 = vsel %vm617, %v616, 0
      %624 = vmatprep.subr.mxu0 0.0
      %625 = vmatpush1.xpose.msra.mxu0 0.0
      %626 = vmatprep.subr.mxu0 0.0
      %627 = vmatpush1.xpose.msra.mxu0 0.0
      %628 = vmatprep.subr.mxu0 0.0
      %629 = vmatpush1.xpose.msra.mxu0 0.0
      %630 = vmatprep.subr.mxu0 0.0
      %631 = vmatpush1.xpose.msra.mxu0 0.0
      %632 = vmatprep.subr.mxu0 0.0
      %633 = vmatpush1.xpose.msra.mxu0 0.0
      %634 = vmatprep.subr.mxu0 0.0
      %635 = vmatpush1.xpose.msra.mxu0 0.0
      %636 = vmatprep.subr.mxu0 0.0
      %637 = vmatpush1.xpose.msra.mxu0 0.0
      %638 = vmatprep.subr.mxu0 0.0
      %639 = vmatpush1.xpose.msra.mxu0 0.0
      %640 = vmatprep.subr.mxu0 0.0
      %641 = vmatpush1.xpose.msra.mxu0 0.0
      %642 = vmatprep.subr.mxu0 0.0
      %643 = vmatpush1.xpose.msra.mxu0 0.0
      %644 = vmatprep.subr.mxu0 0.0
      %645 = vmatpush1.xpose.msra.mxu0 0.0
      %646 = vmatprep.subr.mxu0 0.0
      %647 = vmatpush1.xpose.msra.mxu0 0.0
      %648 = vmatprep.subr.mxu0 0.0
      %649 = vmatpush1.xpose.msra.mxu0 0.0
      %650 = vmatprep.subr.mxu0 0.0
      %651 = vmatpush1.xpose.msra.mxu0 0.0
      %652 = vmatprep.subr.mxu0 0.0
      %653 = vmatpush1.xpose.msra.mxu0 0.0
      %654 = vmatprep.subr.mxu0 0.0
      %655 = vmatpush1.xpose.msra.mxu0 %v622
      %656 = vmatprep.subr.mxu0 0.0
      %657 = vmatpush2.xpose.msra.mxu0 0.0
      %658 = vmatprep.subr.mxu0 0.0
      %659 = vmatpush2.xpose.msra.mxu0 0.0
      %660 = vmatprep.subr.mxu0 0.0
      %661 = vmatpush2.xpose.msra.mxu0 0.0
      %662 = vmatprep.subr.mxu0 0.0
      %663 = vmatpush2.xpose.msra.mxu0 0.0
      %664 = vmatprep.subr.mxu0 0.0
      %665 = vmatpush2.xpose.msra.mxu0 0.0
      %666 = vmatprep.subr.mxu0 0.0
      %667 = vmatpush2.xpose.msra.mxu0 0.0
      %668 = vmatprep.subr.mxu0 0.0
      %669 = vmatpush2.xpose.msra.mxu0 0.0
      %670 = vmatprep.subr.mxu0 0.0
      %671 = vmatpush2.xpose.msra.mxu0 0.0
      %672 = vmatprep.subr.mxu0 0.0
      %673 = vmatpush2.xpose.msra.mxu0 0.0
      %674 = vmatprep.subr.mxu0 0.0
      %675 = vmatpush2.xpose.msra.mxu0 0.0
      %676 = vmatprep.subr.mxu0 0.0
      %677 = vmatpush2.xpose.msra.mxu0 0.0
      %678 = vmatprep.subr.mxu0 0.0
      %679 = vmatpush2.xpose.msra.mxu0 0.0
      %680 = vmatprep.subr.mxu0 0.0
      %681 = vmatpush2.xpose.msra.mxu0 0.0
      %682 = vmatprep.subr.mxu0 0.0
      %683 = vmatpush2.xpose.msra.mxu0 0.0
      %684 = vmatprep.subr.mxu0 0.0
      %685 = vmatpush2.xpose.msra.mxu0 0.0
      %686 = vmatprep.subr.mxu0 0.0
      %687 = vmatpush2.xpose.msra.mxu0 0.0
      %688 = vmatprep.mubr.f32.mxu0 0.0
      %689 = vmatmul.mubr.f32.gmra.mxu0 %v619
      %v690 = vpop.f32.mrf.mxu0
      %v691 = vadd.f32 0.0, %v690
      %v692 = vpop.f32.mrf.mxu0
      %693 = vdwg.mxu0
      %v694 = vmax.f32 %v691, 0.0
      %v696 = vrot.slane %v694, 2
      %v698 = vadd.f32 %v694, %v696
      %v699 = vld [vmem:[%s2] sm:$0xff]
      %v700 = vld [vmem:[%s2 + $0x8] sm:$0xff]
      %v701 = vld [vmem:[%s2 + $0x10] sm:$0xff]
      %v702 = vld [vmem:[%s2 + $0x18] sm:$0xff]
      %v703 = vld [vmem:[%s2 + $0x20] sm:$0xff]
      %v704 = vld [vmem:[%s2 + $0x28] sm:$0xff]
      %v705 = vld [vmem:[%s2 + $0x30] sm:$0xff]
      %v706 = vld [vmem:[%s2 + $0x38] sm:$0xff]
      %vm707 = vcmask 31744
      %v709 = vsel %vm707, %v698, 0
      %v712 = vsel %vm707, %v699, 0
      %v715 = vsel %vm707, %v700, 0
      %v718 = vsel %vm707, %v701, 0
      %v721 = vsel %vm707, %v702, 0
      %v724 = vsel %vm707, %v703, 0
      %v727 = vsel %vm707, %v704, 0
      %v730 = vsel %vm707, %v705, 0
      %v733 = vsel %vm707, %v706, 0
      %735 = vmatprep.subr.mxu0 0.0
      %736 = vmatpush1.xpose.msra.mxu0 0.0
      %737 = vmatprep.subr.mxu0 0.0
      %738 = vmatpush1.xpose.msra.mxu0 0.0
      %739 = vmatprep.subr.mxu0 0.0
      %740 = vmatpush1.xpose.msra.mxu0 0.0
      %741 = vmatprep.subr.mxu0 0.0
      %742 = vmatpush1.xpose.msra.mxu0 0.0
      %743 = vmatprep.subr.mxu0 0.0
      %744 = vmatpush1.xpose.msra.mxu0 0.0
      %745 = vmatprep.subr.mxu0 0.0
      %746 = vmatpush1.xpose.msra.mxu0 0.0
      %747 = vmatprep.subr.mxu0 0.0
      %748 = vmatpush1.xpose.msra.mxu0 0.0
      %749 = vmatprep.subr.mxu0 0.0
      %750 = vmatpush1.xpose.msra.mxu0 0.0
      %751 = vmatprep.subr.mxu0 0.0
      %752 = vmatpush1.xpose.msra.mxu0 %v733
      %753 = vmatprep.subr.mxu0 0.0
      %754 = vmatpush1.xpose.msra.mxu0 %v730
      %755 = vmatprep.subr.mxu0 0.0
      %756 = vmatpush1.xpose.msra.mxu0 %v727
      %757 = vmatprep.subr.mxu0 0.0
      %758 = vmatpush1.xpose.msra.mxu0 %v724
      %759 = vmatprep.subr.mxu0 0.0
      %760 = vmatpush1.xpose.msra.mxu0 %v721
      %761 = vmatprep.subr.mxu0 0.0
      %762 = vmatpush1.xpose.msra.mxu0 %v718
      %763 = vmatprep.subr.mxu0 0.0
      %764 = vmatpush1.xpose.msra.mxu0 %v715
      %765 = vmatprep.subr.mxu0 0.0
      %766 = vmatpush1.xpose.msra.mxu0 %v712
      %767 = vmatprep.subr.mxu0 0.0
      %768 = vmatpush2.xpose.msra.mxu0 0.0
      %769 = vmatprep.subr.mxu0 0.0
      %770 = vmatpush2.xpose.msra.mxu0 0.0
      %771 = vmatprep.subr.mxu0 0.0
      %772 = vmatpush2.xpose.msra.mxu0 0.0
      %773 = vmatprep.subr.mxu0 0.0
      %774 = vmatpush2.xpose.msra.mxu0 0.0
      %775 = vmatprep.subr.mxu0 0.0
      %776 = vmatpush2.xpose.msra.mxu0 0.0
      %777 = vmatprep.subr.mxu0 0.0
      %778 = vmatpush2.xpose.msra.mxu0 0.0
      %779 = vmatprep.subr.mxu0 0.0
      %780 = vmatpush2.xpose.msra.mxu0 0.0
      %781 = vmatprep.subr.mxu0 0.0
      %782 = vmatpush2.xpose.msra.mxu0 0.0
      %783 = vmatprep.subr.mxu0 0.0
      %784 = vmatpush2.xpose.msra.mxu0 0.0
      %785 = vmatprep.subr.mxu0 0.0
      %786 = vmatpush2.xpose.msra.mxu0 0.0
      %787 = vmatprep.subr.mxu0 0.0
      %788 = vmatpush2.xpose.msra.mxu0 0.0
      %789 = vmatprep.subr.mxu0 0.0
      %790 = vmatpush2.xpose.msra.mxu0 0.0
      %791 = vmatprep.subr.mxu0 0.0
      %792 = vmatpush2.xpose.msra.mxu0 0.0
      %793 = vmatprep.subr.mxu0 0.0
      %794 = vmatpush2.xpose.msra.mxu0 0.0
      %795 = vmatprep.subr.mxu0 0.0
      %796 = vmatpush2.xpose.msra.mxu0 0.0
      %797 = vmatprep.subr.mxu0 0.0
      %798 = vmatpush2.xpose.msra.mxu0 0.0
      %799 = vmatprep.mubr.f32.mxu0 0.0
      %800 = vmatmul.mubr.f32.gmra.mxu0 %v709
      %v801 = vpop.f32.mrf.mxu0
      %v802 = vadd.f32 0.0, %v801
      %v803 = vpop.f32.mrf.mxu0
      %804 = vdwg.mxu0
      %v805 = vxor.u32 %v802, 2147483648
      %v806 = vmul.f32 %v805, 1.442695
      %v807 = vpow.pop %v806
      %v808 = vadd.f32 %v807, 1.0
      %v809 = vrcp.pop %v808
      %v810 = vmul.f32 1.0, %v809
      %vm811 = vcmask 517120
      %812 = vst.msk [vmem:[#allocation7] sm:$0x3] %vm811, %v810
    $region25: #{tpu_custom_call.1} parent=1 // pred_fallthru
      _
    // Predicated region
    $region26: #{tpu_custom_call.1} parent=1 // pred_check
      _
    $region27: #{tpu_custom_call.1} parent=1 // pred_check_branch
      %814 = sbr.rel (0) target = $region29
    $region28: #{tpu_custom_call.1} parent=1 // pred_region
      %s816 = ssub.s32 32, 32
      %817 = vsyncadd [#allocation6], %s816
      %s819 = sshll.u32 [#allocation7], 4
      %s820 = int_to_ptr.vmem [resolvable:$true] %s819
      %822 = dma.vmem_to_hbm [thread:$0]  %s820, 32, %s3, [#allocation6]
    $region29: #{tpu_custom_call.1} parent=1 // pred_fallthru
      _
    // Predicated region
    $region30: #{tpu_custom_call.1} parent=1 // pred_check
      _
    $region31: #{tpu_custom_call.1} parent=1 // pred_check_branch
      %824 = sbr.rel (0) target = $region33
    $region32: #{tpu_custom_call.1} parent=1 // pred_region
      %825 = dma.done [#allocation6], 32
    $region33: #{tpu_custom_call.1} parent=1 // pred_fallthru
      _
    %826 = vsyncpa [#allocation5], 1
    %827 = vsyncpa [#allocation6], 1

</llo_original>
